<compile_context>
chip_gen: v6e
topology: v6e:2x2x1
jax: 0.10.0
libtpu: 0.0.40
codegen_flags: <defaults>
</compile_context>

<pallas_src>
import jax
import jax.numpy as jnp
from jax.experimental import pallas as pl
from jax.experimental.pallas import tpu as pltpu


def _round_up(n, m):
    return ((n + m - 1) // m) * m


def _layer_dims(input_dim, hidden_dim):
    return [
        (input_dim, hidden_dim),
        (hidden_dim, hidden_dim * 2),
        (hidden_dim * 2, hidden_dim * 2),
        (hidden_dim * 2, hidden_dim),
        (hidden_dim, 1),
    ]


def _ctgan_disc_kernel(x_ref,
                       w1_ref, b1_ref,
                       w2_ref, b2_ref,
                       w3_ref, b3_ref,
                       w4_ref, b4_ref,
                       w5t_ref, b5_ref,
                       o_ref):
    def hidden_layer(h_bf16, w_ref, b_ref):
        # bf16 MXU operands, f32 accumulation.
        acc = jnp.dot(h_bf16, w_ref[...], preferred_element_type=jnp.float32)
        # Bias add in f32, then LeakyReLU(0.2) epilogue in bf16 (2-per-lane
        # VALU on v6e/v7x; emulated but still correct on v5e).
        h16 = (acc + b_ref[...]).astype(jnp.bfloat16)
        return jnp.maximum(h16, 0.2 * h16)

    # Cast x inside the kernel (keeps the wrapper free of an extra HBM pass).
    h = hidden_layer(x_ref[...].astype(jnp.bfloat16), w1_ref, b1_ref)
    h = hidden_layer(h, w2_ref, b2_ref)
    h = hidden_layer(h, w3_ref, b3_ref)
    h = hidden_layer(h, w4_ref, b4_ref)

    # Final (hidden -> 1) layer: VPU multiply + XLU lane reduction instead of
    # an N=1 matmul (frees the MXU; avoids 1/256-wide MXU result columns).
    logit = jnp.sum(h.astype(jnp.float32) * w5t_ref[...],
                    axis=-1, keepdims=True) + b5_ref[...]          # (tb, 1)

    # Exact sigmoid (output may feed log(1 - D(x)) style losses downstream).
    prob = 1.0 / (1.0 + jnp.exp(-logit))

    # Lane-dense store: broadcast the per-row probability across 128 lanes so
    # every store is an unmasked full-lane vst; wrapper keeps column 0.
    o_ref[...] = jnp.broadcast_to(prob, o_ref.shape).astype(o_ref.dtype)


def ctgan_discriminator_forward(x, prepped, *, tile_b=512):
    """Run the fused MLP discriminator kernel.

    x:       (B, input_dim) float32
    prepped: padded/bf16 params from prepare_params()
    returns: (B, 1) float32 in (0, 1)
    """
    B, d_in = x.shape
    assert prepped["w1"].shape[0] == d_in, (prepped["w1"].shape, d_in)

    # Batch tile: multiple of 16 (bf16-friendly sublanes), capped so the grid
    # has >=2 steps when the batch allows (megacore on v7x), never (much)
    # larger than the batch itself.
    tb = min(tile_b, _round_up(-(-B // 2), 16))
    tb = max(min(tb, _round_up(B, 8)), 8)

    grid = (pl.cdiv(B, tb),)   # no batch padding; last partial block is masked

    operands = (
        x,
        prepped["w1"], prepped["b1"],
        prepped["w2"], prepped["b2"],
        prepped["w3"], prepped["b3"],
        prepped["w4"], prepped["b4"],
        prepped["w5t"], prepped["b5"],
    )

    def resident_spec(arr):
        # Whole array as one block; constant index_map + single buffering
        # -> DMA'd once, VMEM-resident, no double-buffer VMEM cost.
        return pl.BlockSpec(arr.shape, lambda i: (0, 0),
                            pipeline_mode=pl.Buffered(1))

    in_specs = [pl.BlockSpec((tb, d_in), lambda i: (i, 0))]
    in_specs += [resident_spec(op) for op in operands[1:]]

    out = pl.pallas_call(
        _ctgan_disc_kernel,
        out_shape=jax.ShapeDtypeStruct((B, 128), jnp.float32),
        grid_spec=pl.GridSpec(
            grid=grid,
            in_specs=in_specs,
            out_specs=pl.BlockSpec((tb, 128), lambda i: (i, 0)),
        ),
        compiler_params=pltpu.CompilerParams(
            dimension_semantics=("parallel",),      # megacore sharding on v7x
            vmem_limit_bytes=48 * 1024 * 1024,      # fits v7x 64 MiB physical
        ),
    )(*operands)

    return out[:, :1]


def init_params(key, input_dim, hidden_dim):
    """Deterministic PyTorch-style (uniform +-1/sqrt(fan_in)) Linear init.

    Weights stored (in_features, out_features) so h = h @ W + b.
    """
    params = {}
    for idx, (fan_in, fan_out) in enumerate(_layer_dims(input_dim, hidden_dim), start=1):
        key, kw, kb = jax.random.split(key, 3)
        bound = 1.0 / (fan_in ** 0.5)
        params[f"w{idx}"] = jax.random.uniform(
            kw, (fan_in, fan_out), jnp.float32, minval=-bound, maxval=bound)
        params[f"b{idx}"] = jax.random.uniform(
            kb, (1, fan_out), jnp.float32, minval=-bound, maxval=bound)
    return params


def prepare_params(params, input_dim, hidden_dim):
    """Zero-pad hidden feature dims to multiples of 128; weights -> bf16.

    The first layer's input dim is NOT padded (x is fed unpadded); padded
    rows/cols elsewhere are exactly zero, so the result column is unchanged.
    The last layer's weight is stored as a row (1, hidden_pad) for the
    in-kernel lane reduction and kept f32 (VPU path).
    """
    dims = _layer_dims(input_dim, hidden_dim)
    prepped = {}
    for idx in range(1, 5):
        fi, fo = dims[idx - 1]
        fip = fi if idx == 1 else _round_up(fi, 128)
        fop = _round_up(fo, 128)
        w = jnp.zeros((fip, fop), jnp.float32).at[:fi, :fo].set(params[f"w{idx}"])
        b = jnp.zeros((1, fop), jnp.float32).at[:, :fo].set(params[f"b{idx}"])
        prepped[f"w{idx}"] = w.astype(jnp.bfloat16)
        prepped[f"b{idx}"] = b
    fi, _ = dims[4]
    fip = _round_up(fi, 128)
    w5t = jnp.zeros((1, fip), jnp.float32).at[:, :fi].set(params["w5"][:, 0][None, :])
    prepped["w5t"] = w5t
    prepped["b5"] = params["b5"].astype(jnp.float32)  # (1, 1)
    return prepped


def _reference_forward(x, params):
    """Plain-JAX f32 reference (eval-mode dropout) for sanity checking."""
    h = x
    for idx in range(1, 5):
        h = h @ params[f"w{idx}"] + params[f"b{idx}"]
        h = jnp.where(h >= 0, h, 0.2 * h)
    h = h @ params["w5"] + params["b5"]
    return jax.nn.sigmoid(h)


if __name__ == "__main__":
    key = jax.random.PRNGKey(0)
    batch, input_dim, hidden_dim = 40, 32, 32

    kx, kp = jax.random.split(key)
    x = jax.random.normal(kx, (batch, input_dim), jnp.float32)
    params = init_params(kp, input_dim, hidden_dim)
    prepped = prepare_params(params, input_dim, hidden_dim)

    # tile_b=32 -> tb=32, grid=(2,) with a partial last block, so both the
    # batch-tiled pipeline path and boundary masking are exercised.
    out = ctgan_discriminator_forward(x, prepped, tile_b=32)
    out = jax.block_until_ready(out)

    ref = _reference_forward(x, params)
    assert out.shape == (batch, 1), out.shape
    max_err = float(jnp.max(jnp.abs(out - ref)))
    # bf16 MXU operands + bf16 LeakyReLU epilogue vs f32 reference.
    assert max_err < 3e-2, max_err
    print("KERNEL_OK")
</pallas_src>

<mosaic_0001>
module attributes {stable_mosaic.version = 11 : i64} {
  func.func @_ctgan_disc_kernel(%arg0: i32, %arg1: memref<32x32xf32, #tpu.memory_space<vmem>>, %arg2: memref<32x128xbf16, #tpu.memory_space<vmem>>, %arg3: memref<1x128xf32, #tpu.memory_space<vmem>>, %arg4: memref<128x128xbf16, #tpu.memory_space<vmem>>, %arg5: memref<1x128xf32, #tpu.memory_space<vmem>>, %arg6: memref<128x128xbf16, #tpu.memory_space<vmem>>, %arg7: memref<1x128xf32, #tpu.memory_space<vmem>>, %arg8: memref<128x128xbf16, #tpu.memory_space<vmem>>, %arg9: memref<1x128xf32, #tpu.memory_space<vmem>>, %arg10: memref<1x128xf32, #tpu.memory_space<vmem>>, %arg11: memref<1x1xf32, #tpu.memory_space<vmem>>, %arg12: memref<32x128xf32, #tpu.memory_space<vmem>>) attributes {dimension_semantics = [#tpu.dimension_semantics<parallel>], iteration_bounds = array<i64: 2>, scalar_prefetch = 0 : i64, scratch_operands = 0 : i64, tpu.core_type = #tpu.core_type<tc>, window_params = [{transform_indices = @transform_0, window_bounds = array<i64: 32, 32>}, {pipeline_mode = #tpu.pipeline_mode<synchronous>, transform_indices = @transform_1, window_bounds = array<i64: 32, 128>}, {pipeline_mode = #tpu.pipeline_mode<synchronous>, transform_indices = @transform_2, window_bounds = array<i64: 1, 128>}, {pipeline_mode = #tpu.pipeline_mode<synchronous>, transform_indices = @transform_3, window_bounds = array<i64: 128, 128>}, {pipeline_mode = #tpu.pipeline_mode<synchronous>, transform_indices = @transform_4, window_bounds = array<i64: 1, 128>}, {pipeline_mode = #tpu.pipeline_mode<synchronous>, transform_indices = @transform_5, window_bounds = array<i64: 128, 128>}, {pipeline_mode = #tpu.pipeline_mode<synchronous>, transform_indices = @transform_6, window_bounds = array<i64: 1, 128>}, {pipeline_mode = #tpu.pipeline_mode<synchronous>, transform_indices = @transform_7, window_bounds = array<i64: 128, 128>}, {pipeline_mode = #tpu.pipeline_mode<synchronous>, transform_indices = @transform_8, window_bounds = array<i64: 1, 128>}, {pipeline_mode = #tpu.pipeline_mode<synchronous>, transform_indices = @transform_9, window_bounds = array<i64: 1, 128>}, {pipeline_mode = #tpu.pipeline_mode<synchronous>, transform_indices = @transform_10, window_bounds = array<i64: 1, 1>}, {transform_indices = @transform_11, window_bounds = array<i64: 32, 128>}]} {
    %c0 = arith.constant 0 : index
    %c0_0 = arith.constant 0 : index
    %0 = vector.load %arg1[%c0, %c0_0] : memref<32x32xf32, #tpu.memory_space<vmem>>, vector<32x32xf32>
    %1 = arith.truncf %0 : vector<32x32xf32> to vector<32x32xbf16>
    %c0_1 = arith.constant 0 : index
    %c0_2 = arith.constant 0 : index
    %2 = vector.load %arg2[%c0_1, %c0_2] : memref<32x128xbf16, #tpu.memory_space<vmem>>, vector<32x128xbf16>
    %cst = arith.constant dense<0.000000e+00> : vector<32x128xf32>
    %3 = tpu.matmul %1, %2, %cst {dimension_numbers = #tpu.dot_dimension_numbers<[1], [0], [0], [1], [0, 0, 1, 1], [], []>} : vector<32x32xbf16>, vector<32x128xbf16>, vector<32x128xf32> -> vector<32x128xf32>
    %c0_3 = arith.constant 0 : index
    %c0_4 = arith.constant 0 : index
    %4 = vector.load %arg3[%c0_3, %c0_4] : memref<1x128xf32, #tpu.memory_space<vmem>>, vector<1x128xf32>
    %5 = vector.broadcast %4 : vector<1x128xf32> to vector<32x128xf32>
    %6 = arith.addf %3, %5 : vector<32x128xf32>
    %7 = arith.truncf %6 : vector<32x128xf32> to vector<32x128xbf16>
    %cst_5 = arith.constant 2.001950e-01 : bf16
    %8 = vector.broadcast %cst_5 : bf16 to vector<32x128xbf16>
    %9 = arith.mulf %8, %7 : vector<32x128xbf16>
    %10 = arith.maximumf %7, %9 : vector<32x128xbf16>
    %c0_6 = arith.constant 0 : index
    %c0_7 = arith.constant 0 : index
    %11 = vector.load %arg4[%c0_6, %c0_7] : memref<128x128xbf16, #tpu.memory_space<vmem>>, vector<128x128xbf16>
    %cst_8 = arith.constant dense<0.000000e+00> : vector<32x128xf32>
    %12 = tpu.matmul %10, %11, %cst_8 {dimension_numbers = #tpu.dot_dimension_numbers<[1], [0], [0], [1], [0, 0, 1, 1], [], []>} : vector<32x128xbf16>, vector<128x128xbf16>, vector<32x128xf32> -> vector<32x128xf32>
    %c0_9 = arith.constant 0 : index
    %c0_10 = arith.constant 0 : index
    %13 = vector.load %arg5[%c0_9, %c0_10] : memref<1x128xf32, #tpu.memory_space<vmem>>, vector<1x128xf32>
    %14 = vector.broadcast %13 : vector<1x128xf32> to vector<32x128xf32>
    %15 = arith.addf %12, %14 : vector<32x128xf32>
    %16 = arith.truncf %15 : vector<32x128xf32> to vector<32x128xbf16>
    %cst_11 = arith.constant 2.001950e-01 : bf16
    %17 = vector.broadcast %cst_11 : bf16 to vector<32x128xbf16>
    %18 = arith.mulf %17, %16 : vector<32x128xbf16>
    %19 = arith.maximumf %16, %18 : vector<32x128xbf16>
    %c0_12 = arith.constant 0 : index
    %c0_13 = arith.constant 0 : index
    %20 = vector.load %arg6[%c0_12, %c0_13] : memref<128x128xbf16, #tpu.memory_space<vmem>>, vector<128x128xbf16>
    %cst_14 = arith.constant dense<0.000000e+00> : vector<32x128xf32>
    %21 = tpu.matmul %19, %20, %cst_14 {dimension_numbers = #tpu.dot_dimension_numbers<[1], [0], [0], [1], [0, 0, 1, 1], [], []>} : vector<32x128xbf16>, vector<128x128xbf16>, vector<32x128xf32> -> vector<32x128xf32>
    %c0_15 = arith.constant 0 : index
    %c0_16 = arith.constant 0 : index
    %22 = vector.load %arg7[%c0_15, %c0_16] : memref<1x128xf32, #tpu.memory_space<vmem>>, vector<1x128xf32>
    %23 = vector.broadcast %22 : vector<1x128xf32> to vector<32x128xf32>
    %24 = arith.addf %21, %23 : vector<32x128xf32>
    %25 = arith.truncf %24 : vector<32x128xf32> to vector<32x128xbf16>
    %cst_17 = arith.constant 2.001950e-01 : bf16
    %26 = vector.broadcast %cst_17 : bf16 to vector<32x128xbf16>
    %27 = arith.mulf %26, %25 : vector<32x128xbf16>
    %28 = arith.maximumf %25, %27 : vector<32x128xbf16>
    %c0_18 = arith.constant 0 : index
    %c0_19 = arith.constant 0 : index
    %29 = vector.load %arg8[%c0_18, %c0_19] : memref<128x128xbf16, #tpu.memory_space<vmem>>, vector<128x128xbf16>
    %cst_20 = arith.constant dense<0.000000e+00> : vector<32x128xf32>
    %30 = tpu.matmul %28, %29, %cst_20 {dimension_numbers = #tpu.dot_dimension_numbers<[1], [0], [0], [1], [0, 0, 1, 1], [], []>} : vector<32x128xbf16>, vector<128x128xbf16>, vector<32x128xf32> -> vector<32x128xf32>
    %c0_21 = arith.constant 0 : index
    %c0_22 = arith.constant 0 : index
    %31 = vector.load %arg9[%c0_21, %c0_22] : memref<1x128xf32, #tpu.memory_space<vmem>>, vector<1x128xf32>
    %32 = vector.broadcast %31 : vector<1x128xf32> to vector<32x128xf32>
    %33 = arith.addf %30, %32 : vector<32x128xf32>
    %34 = arith.truncf %33 : vector<32x128xf32> to vector<32x128xbf16>
    %cst_23 = arith.constant 2.001950e-01 : bf16
    %35 = vector.broadcast %cst_23 : bf16 to vector<32x128xbf16>
    %36 = arith.mulf %35, %34 : vector<32x128xbf16>
    %37 = arith.maximumf %34, %36 : vector<32x128xbf16>
    %38 = arith.extf %37 : vector<32x128xbf16> to vector<32x128xf32>
    %c0_24 = arith.constant 0 : index
    %c0_25 = arith.constant 0 : index
    %39 = vector.load %arg10[%c0_24, %c0_25] : memref<1x128xf32, #tpu.memory_space<vmem>>, vector<1x128xf32>
    %40 = vector.broadcast %39 : vector<1x128xf32> to vector<32x128xf32>
    %41 = arith.mulf %38, %40 : vector<32x128xf32>
    %cst_26 = arith.constant dense<0.000000e+00> : vector<32xf32>
    %42 = vector.multi_reduction <add>, %41, %cst_26 [1] : vector<32x128xf32> to vector<32xf32>
    %43 = vector.shape_cast %42 : vector<32xf32> to vector<32x1xf32>
    %c0_27 = arith.constant 0 : index
    %c0_28 = arith.constant 0 : index
    %44 = vector.load %arg11[%c0_27, %c0_28] : memref<1x1xf32, #tpu.memory_space<vmem>>, vector<1x1xf32>
    %45 = vector.broadcast %44 : vector<1x1xf32> to vector<32x1xf32>
    %46 = arith.addf %43, %45 : vector<32x1xf32>
    %cst_29 = arith.constant 0.000000e+00 : f32
    %47 = vector.broadcast %cst_29 : f32 to vector<32x1xf32>
    %48 = arith.subf %47, %46 : vector<32x1xf32>
    %49 = math.exp %48 : vector<32x1xf32>
    %cst_30 = arith.constant 1.000000e+00 : f32
    %50 = vector.broadcast %cst_30 : f32 to vector<32x1xf32>
    %51 = arith.addf %50, %49 : vector<32x1xf32>
    %cst_31 = arith.constant 1.000000e+00 : f32
    %52 = vector.broadcast %cst_31 : f32 to vector<32x1xf32>
    %53 = arith.divf %52, %51 : vector<32x1xf32>
    %54 = vector.shape_cast %53 : vector<32x1xf32> to vector<32x1xf32>
    %55 = vector.broadcast %54 : vector<32x1xf32> to vector<32x128xf32>
    %c0_32 = arith.constant 0 : index
    %c0_33 = arith.constant 0 : index
    %56 = vector.load %arg12[%c0_32, %c0_33] : memref<32x128xf32, #tpu.memory_space<vmem>>, vector<32x128xf32>
    tpu.vector_store %arg12[%c0_32, %c0_33], %55 {strides = array<i32>} : memref<32x128xf32, #tpu.memory_space<vmem>>, vector<32x128xf32>,
    return
  }
  func.func @transform_0(%arg0: i32) -> (i32, i32) {
    %c0_i32 = arith.constant 0 : i32
    %c0_i32_0 = arith.constant 0 : i32
    return %arg0, %c0_i32 : i32, i32
  }
  func.func @transform_1(%arg0: i32) -> (i32, i32) {
    %c0_i32 = arith.constant 0 : i32
    %c0_i32_0 = arith.constant 0 : i32
    %c0_i32_1 = arith.constant 0 : i32
    return %c0_i32, %c0_i32_0 : i32, i32
  }
  func.func @transform_2(%arg0: i32) -> (i32, i32) {
    %c0_i32 = arith.constant 0 : i32
    %c0_i32_0 = arith.constant 0 : i32
    %c0_i32_1 = arith.constant 0 : i32
    return %c0_i32, %c0_i32_0 : i32, i32
  }
  func.func @transform_3(%arg0: i32) -> (i32, i32) {
    %c0_i32 = arith.constant 0 : i32
    %c0_i32_0 = arith.constant 0 : i32
    %c0_i32_1 = arith.constant 0 : i32
    return %c0_i32, %c0_i32_0 : i32, i32
  }
  func.func @transform_4(%arg0: i32) -> (i32, i32) {
    %c0_i32 = arith.constant 0 : i32
    %c0_i32_0 = arith.constant 0 : i32
    %c0_i32_1 = arith.constant 0 : i32
    return %c0_i32, %c0_i32_0 : i32, i32
  }
  func.func @transform_5(%arg0: i32) -> (i32, i32) {
    %c0_i32 = arith.constant 0 : i32
    %c0_i32_0 = arith.constant 0 : i32
    %c0_i32_1 = arith.constant 0 : i32
    return %c0_i32, %c0_i32_0 : i32, i32
  }
  func.func @transform_6(%arg0: i32) -> (i32, i32) {
    %c0_i32 = arith.constant 0 : i32
    %c0_i32_0 = arith.constant 0 : i32
    %c0_i32_1 = arith.constant 0 : i32
    return %c0_i32, %c0_i32_0 : i32, i32
  }
  func.func @transform_7(%arg0: i32) -> (i32, i32) {
    %c0_i32 = arith.constant 0 : i32
    %c0_i32_0 = arith.constant 0 : i32
    %c0_i32_1 = arith.constant 0 : i32
    return %c0_i32, %c0_i32_0 : i32, i32
  }
  func.func @transform_8(%arg0: i32) -> (i32, i32) {
    %c0_i32 = arith.constant 0 : i32
    %c0_i32_0 = arith.constant 0 : i32
    %c0_i32_1 = arith.constant 0 : i32
    return %c0_i32, %c0_i32_0 : i32, i32
  }
  func.func @transform_9(%arg0: i32) -> (i32, i32) {
    %c0_i32 = arith.constant 0 : i32
    %c0_i32_0 = arith.constant 0 : i32
    %c0_i32_1 = arith.constant 0 : i32
    return %c0_i32, %c0_i32_0 : i32, i32
  }
  func.func @transform_10(%arg0: i32) -> (i32, i32) {
    %c0_i32 = arith.constant 0 : i32
    %c0_i32_0 = arith.constant 0 : i32
    %c0_i32_1 = arith.constant 0 : i32
    return %c0_i32, %c0_i32_0 : i32, i32
  }
  func.func @transform_11(%arg0: i32) -> (i32, i32) {
    %c0_i32 = arith.constant 0 : i32
    %c0_i32_0 = arith.constant 0 : i32
    return %arg0, %c0_i32 : i32, i32
  }
}

</mosaic_0001>

<llo_original>
// kernel: tpu_custom_call.1
$region0: #{tpu_custom_call.1}
  #allocation0 [shape = 'u32[]', space=smem, size = 0x4, offset = 0x4, fixed_abs, tag = 'smem constant byte address 0x4 - core index']
  #allocation1 [shape = 'u32[144,128]{1,0:T(1,128)}', space=vmem, size = 0x12000, scoped, tag = 'internal scratch']
  #allocation2 [shape = 'f32[1,1]{1,0:T(1,128)S(1)}', space=vmem, size = 0x200, scoped, tag = 'scoped memory for tpu_custom_call.1']
  %s0 = inlined_call_operand.vmem [shape: f32[40,32], index: 0, kind: input, shape index: {}]
  %s1 = inlined_call_operand.hbm [shape: bf16[32,128], index: 1, kind: input, shape index: {}]
  %s2 = inlined_call_operand.vmem [shape: f32[1,128], index: 2, kind: input, shape index: {}]
  %s3 = inlined_call_operand.vmem [shape: bf16[128,128], index: 3, kind: input, shape index: {}]
  %s4 = inlined_call_operand.vmem [shape: f32[1,128], index: 4, kind: input, shape index: {}]
  %s5 = inlined_call_operand.hbm [shape: bf16[128,128], index: 5, kind: input, shape index: {}]
  %s6 = inlined_call_operand.vmem [shape: f32[1,128], index: 6, kind: input, shape index: {}]
  %s7 = inlined_call_operand.hbm [shape: bf16[128,128], index: 7, kind: input, shape index: {}]
  %s8 = inlined_call_operand.vmem [shape: f32[1,128], index: 8, kind: input, shape index: {}]
  %s9 = inlined_call_operand.vmem [shape: f32[1,128], index: 9, kind: input, shape index: {}]
  %s10 = inlined_call_operand.<no memory space> [shape: f32[1,1], index: 10, kind: input, shape index: {}]
  %s11 = inlined_call_operand.hbm [shape: f32[40,128], index: 11, kind: output, shape index: {}]
  %s12 = sld [smem:[#allocation0]]
  $region89: #{tpu_custom_call.1} parent=0
    _
  %s14 = ssub.s32 1, %s12
  %s15 = scalar_select 0, %s14, %s12
  %v16 = vstv %s10
  %17 = vst [vmem:[#allocation2] sm:$0x1] %v16
  $region1: #{tpu_custom_call.1} parent=0
    #allocation3 [shape = 'u8[8192]{0}', space=vmem, size = 0x2000, scoped, tag = 'input window, operand 1, single buffered']
    #allocation4 [shape = 's32[2]{0}', space=sflag, size = 0x8, scoped, tag = 'scoped memory for tpu_custom_call.1']
    #allocation5 [shape = 's32[2]{0}', space=sflag, size = 0x8, scoped, tag = 'scoped memory for tpu_custom_call.1']
    #allocation6 [shape = 'u8[32768]{0}', space=vmem, size = 0x8000, scoped, tag = 'input window, operand 5, single buffered']
    #allocation7 [shape = 's32[1]{0}', space=sflag, size = 0x4, scoped, tag = 'scoped memory for tpu_custom_call.1']
    #allocation8 [shape = 'u8[32768]{0}', space=vmem, size = 0x8000, scoped, tag = 'input window, operand 7, single buffered']
    #allocation9 [shape = 'u8[32768]{0}', space=vmem, size = 0x8000, scoped, tag = 'output window, operand 0']
    %18 = vsyncpa [#allocation4], 0
    %19 = vsyncpa [#allocation7], 0
    %20 = vsyncpa [#allocation5], 0
    %s21 = scalar_lea.sflag [#allocation5], 1
    %22 = vsyncpa %s21, 0
    loop: start=0, step=1, limit=4
    $region2: #{tpu_custom_call.1} parent=1 // loop_pre_header
      _
    $region3: #{tpu_custom_call.1} parent=1 // loop_header
      %s24 = sphi 0, %s28
      %p25 = scmp.ge.s32.totalorder %s24, 4
      %s34 = sphi 0, %s36
      %s37 = sphi 0, %s34
      %s38 = sphi 0, %s37
      %s54 = sphi 0, %s38
      %s58 = sphi 0, %s58
      %s60 = sphi 0, %s58
      %s61 = sphi 0, %s60
      %s75 = sphi 0, %s61
      %s79 = sphi 0, %s79
      %s81 = sphi 0, %s79
      %s82 = sphi 0, %s81
      %s96 = sphi 0, %s82
      %s100 = sphi 0, %s100
      %s102 = sphi 0, %s100
      %s103 = sphi 0, %s102
      %s117 = sphi 0, %s103
      %s121 = sphi 0, %s121
      %s123 = sphi 0, %s121
      %s124 = sphi 0, %s123
      %s138 = sphi 0, %s124
      %s142 = sphi 0, %s142
      %s144 = sphi 0, %s142
      %s145 = sphi 0, %s144
      %s159 = sphi 0, %s145
      %s163 = sphi 0, %s163
      %s165 = sphi 0, %s163
      %s166 = sphi 0, %s165
      %s180 = sphi 0, %s166
      %s184 = sphi 0, %s184
      %s186 = sphi 0, %s184
      %s187 = sphi 0, %s186
      %s201 = sphi 0, %s187
      %s205 = sphi 0, %s205
      %s207 = sphi 0, %s205
      %s208 = sphi 0, %s207
      %s222 = sphi 0, %s208
      %s226 = sphi 0, %s226
      %s228 = sphi 0, %s226
      %s229 = sphi 0, %s228
      %s243 = sphi 0, %s229
      %s247 = sphi 0, %s247
      %s249 = sphi 0, %s247
      %s250 = sphi 0, %s249
      %s264 = sphi 0, %s250
      %s270 = sphi 0, %s272
      %s273 = sphi 0, %s270
      %s274 = sphi 0, %s273
      %s290 = sphi 0, %s274
    $region4: #{tpu_custom_call.1} parent=1 // loop_header_branch
      %27 = sbr.rel (%p25) target = $region8
    $region5: #{tpu_custom_call.1} parent=1 // loop_body
      %s29 = ssub.s32 %s24, 1
      %s30 = ssub.s32 %s24, 2
      %s31 = sadd.s32 %s24, 1
      %s32 = ssub.s32 %s24, %s31
      %p33 = scmp.eq.s32.totalorder %s32, 0
      %s35 = sadd.s32 %s34, 1
      %s36 = scalar_select %p33, %s34, %s35
      %p39 = pneg %p33
      %p40 = scmp.eq.s32.totalorder %s24, 1
      %p41 = por %p39, %p40
      %p42 = scmp.ne.s32.totalorder %s34, %s37
      %p43 = scmp.eq.s32.totalorder %s24, 0
      %p44 = por %p42, %p43
      %p45 = scmp.ne.s32.totalorder %s34, %s37
      %p46 = scmp.eq.s32.totalorder %s29, 1
      %p47 = por %p45, %p46
      %p48 = scmp.ne.s32.totalorder %s37, %s38
      %p49 = scmp.eq.s32.totalorder %s29, 0
      %p50 = por %p48, %p49
      %p51 = scmp.ne.s32.totalorder %s37, %s38
      %p52 = scmp.eq.s32.totalorder %s30, 1
      %p53 = por %p51, %p52
      %p55 = scmp.ne.s32.totalorder %s38, %s54
      %p56 = scmp.eq.s32.totalorder %s30, 0
      %p57 = por %p55, %p56
      %s59 = sadd.s32 %s58, 1
      %p62 = scmp.eq.s32.totalorder %s24, 1
      %p63 = scmp.ne.s32.totalorder %s58, %s60
      %p64 = scmp.eq.s32.totalorder %s24, 0
      %p65 = por %p63, %p64
      %p66 = scmp.ne.s32.totalorder %s58, %s60
      %p67 = scmp.eq.s32.totalorder %s29, 1
      %p68 = por %p66, %p67
      %p69 = scmp.ne.s32.totalorder %s60, %s61
      %p70 = scmp.eq.s32.totalorder %s29, 0
      %p71 = por %p69, %p70
      %p72 = scmp.ne.s32.totalorder %s60, %s61
      %p73 = scmp.eq.s32.totalorder %s30, 1
      %p74 = por %p72, %p73
      %p76 = scmp.ne.s32.totalorder %s61, %s75
      %p77 = scmp.eq.s32.totalorder %s30, 0
      %p78 = por %p76, %p77
      %s80 = sadd.s32 %s79, 1
      %p83 = scmp.eq.s32.totalorder %s24, 1
      %p84 = scmp.ne.s32.totalorder %s79, %s81
      %p85 = scmp.eq.s32.totalorder %s24, 0
      %p86 = por %p84, %p85
      %p87 = scmp.ne.s32.totalorder %s79, %s81
      %p88 = scmp.eq.s32.totalorder %s29, 1
      %p89 = por %p87, %p88
      %p90 = scmp.ne.s32.totalorder %s81, %s82
      %p91 = scmp.eq.s32.totalorder %s29, 0
      %p92 = por %p90, %p91
      %p93 = scmp.ne.s32.totalorder %s81, %s82
      %p94 = scmp.eq.s32.totalorder %s30, 1
      %p95 = por %p93, %p94
      %p97 = scmp.ne.s32.totalorder %s82, %s96
      %p98 = scmp.eq.s32.totalorder %s30, 0
      %p99 = por %p97, %p98
      %s101 = sadd.s32 %s100, 1
      %p104 = scmp.eq.s32.totalorder %s24, 1
      %p105 = scmp.ne.s32.totalorder %s100, %s102
      %p106 = scmp.eq.s32.totalorder %s24, 0
      %p107 = por %p105, %p106
      %p108 = scmp.ne.s32.totalorder %s100, %s102
      %p109 = scmp.eq.s32.totalorder %s29, 1
      %p110 = por %p108, %p109
      %p111 = scmp.ne.s32.totalorder %s102, %s103
      %p112 = scmp.eq.s32.totalorder %s29, 0
      %p113 = por %p111, %p112
      %p114 = scmp.ne.s32.totalorder %s102, %s103
      %p115 = scmp.eq.s32.totalorder %s30, 1
      %p116 = por %p114, %p115
      %p118 = scmp.ne.s32.totalorder %s103, %s117
      %p119 = scmp.eq.s32.totalorder %s30, 0
      %p120 = por %p118, %p119
      %s122 = sadd.s32 %s121, 1
      %p125 = scmp.eq.s32.totalorder %s24, 1
      %p126 = scmp.ne.s32.totalorder %s121, %s123
      %p127 = scmp.eq.s32.totalorder %s24, 0
      %p128 = por %p126, %p127
      %p129 = scmp.ne.s32.totalorder %s121, %s123
      %p130 = scmp.eq.s32.totalorder %s29, 1
      %p131 = por %p129, %p130
      %p132 = scmp.ne.s32.totalorder %s123, %s124
      %p133 = scmp.eq.s32.totalorder %s29, 0
      %p134 = por %p132, %p133
      %p135 = scmp.ne.s32.totalorder %s123, %s124
      %p136 = scmp.eq.s32.totalorder %s30, 1
      %p137 = por %p135, %p136
      %p139 = scmp.ne.s32.totalorder %s124, %s138
      %p140 = scmp.eq.s32.totalorder %s30, 0
      %p141 = por %p139, %p140
      %s143 = sadd.s32 %s142, 1
      %p146 = scmp.eq.s32.totalorder %s24, 1
      %p147 = scmp.ne.s32.totalorder %s142, %s144
      %p148 = scmp.eq.s32.totalorder %s24, 0
      %p149 = por %p147, %p148
      %p150 = scmp.ne.s32.totalorder %s142, %s144
      %p151 = scmp.eq.s32.totalorder %s29, 1
      %p152 = por %p150, %p151
      %p153 = scmp.ne.s32.totalorder %s144, %s145
      %p154 = scmp.eq.s32.totalorder %s29, 0
      %p155 = por %p153, %p154
      %p156 = scmp.ne.s32.totalorder %s144, %s145
      %p157 = scmp.eq.s32.totalorder %s30, 1
      %p158 = por %p156, %p157
      %p160 = scmp.ne.s32.totalorder %s145, %s159
      %p161 = scmp.eq.s32.totalorder %s30, 0
      %p162 = por %p160, %p161
      %s164 = sadd.s32 %s163, 1
      %p167 = scmp.eq.s32.totalorder %s24, 1
      %p168 = scmp.ne.s32.totalorder %s163, %s165
      %p169 = scmp.eq.s32.totalorder %s24, 0
      %p170 = por %p168, %p169
      %p171 = scmp.ne.s32.totalorder %s163, %s165
      %p172 = scmp.eq.s32.totalorder %s29, 1
      %p173 = por %p171, %p172
      %p174 = scmp.ne.s32.totalorder %s165, %s166
      %p175 = scmp.eq.s32.totalorder %s29, 0
      %p176 = por %p174, %p175
      %p177 = scmp.ne.s32.totalorder %s165, %s166
      %p178 = scmp.eq.s32.totalorder %s30, 1
      %p179 = por %p177, %p178
      %p181 = scmp.ne.s32.totalorder %s166, %s180
      %p182 = scmp.eq.s32.totalorder %s30, 0
      %p183 = por %p181, %p182
      %s185 = sadd.s32 %s184, 1
      %p188 = scmp.eq.s32.totalorder %s24, 1
      %p189 = scmp.ne.s32.totalorder %s184, %s186
      %p190 = scmp.eq.s32.totalorder %s24, 0
      %p191 = por %p189, %p190
      %p192 = scmp.ne.s32.totalorder %s184, %s186
      %p193 = scmp.eq.s32.totalorder %s29, 1
      %p194 = por %p192, %p193
      %p195 = scmp.ne.s32.totalorder %s186, %s187
      %p196 = scmp.eq.s32.totalorder %s29, 0
      %p197 = por %p195, %p196
      %p198 = scmp.ne.s32.totalorder %s186, %s187
      %p199 = scmp.eq.s32.totalorder %s30, 1
      %p200 = por %p198, %p199
      %p202 = scmp.ne.s32.totalorder %s187, %s201
      %p203 = scmp.eq.s32.totalorder %s30, 0
      %p204 = por %p202, %p203
      %s206 = sadd.s32 %s205, 1
      %p209 = scmp.eq.s32.totalorder %s24, 1
      %p210 = scmp.ne.s32.totalorder %s205, %s207
      %p211 = scmp.eq.s32.totalorder %s24, 0
      %p212 = por %p210, %p211
      %p213 = scmp.ne.s32.totalorder %s205, %s207
      %p214 = scmp.eq.s32.totalorder %s29, 1
      %p215 = por %p213, %p214
      %p216 = scmp.ne.s32.totalorder %s207, %s208
      %p217 = scmp.eq.s32.totalorder %s29, 0
      %p218 = por %p216, %p217
      %p219 = scmp.ne.s32.totalorder %s207, %s208
      %p220 = scmp.eq.s32.totalorder %s30, 1
      %p221 = por %p219, %p220
      %p223 = scmp.ne.s32.totalorder %s208, %s222
      %p224 = scmp.eq.s32.totalorder %s30, 0
      %p225 = por %p223, %p224
      %s227 = sadd.s32 %s226, 1
      %p230 = scmp.eq.s32.totalorder %s24, 1
      %p231 = scmp.ne.s32.totalorder %s226, %s228
      %p232 = scmp.eq.s32.totalorder %s24, 0
      %p233 = por %p231, %p232
      %p234 = scmp.ne.s32.totalorder %s226, %s228
      %p235 = scmp.eq.s32.totalorder %s29, 1
      %p236 = por %p234, %p235
      %p237 = scmp.ne.s32.totalorder %s228, %s229
      %p238 = scmp.eq.s32.totalorder %s29, 0
      %p239 = por %p237, %p238
      %p240 = scmp.ne.s32.totalorder %s228, %s229
      %p241 = scmp.eq.s32.totalorder %s30, 1
      %p242 = por %p240, %p241
      %p244 = scmp.ne.s32.totalorder %s229, %s243
      %p245 = scmp.eq.s32.totalorder %s30, 0
      %p246 = por %p244, %p245
      %s248 = sadd.s32 %s247, 1
      %p251 = scmp.eq.s32.totalorder %s24, 1
      %p252 = scmp.ne.s32.totalorder %s247, %s249
      %p253 = scmp.eq.s32.totalorder %s24, 0
      %p254 = por %p252, %p253
      %p255 = scmp.ne.s32.totalorder %s247, %s249
      %p256 = scmp.eq.s32.totalorder %s29, 1
      %p257 = por %p255, %p256
      %p258 = scmp.ne.s32.totalorder %s249, %s250
      %p259 = scmp.eq.s32.totalorder %s29, 0
      %p260 = por %p258, %p259
      %p261 = scmp.ne.s32.totalorder %s249, %s250
      %p262 = scmp.eq.s32.totalorder %s30, 1
      %p263 = por %p261, %p262
      %p265 = scmp.ne.s32.totalorder %s250, %s264
      %p266 = scmp.eq.s32.totalorder %s30, 0
      %p267 = por %p265, %p266
      %s268 = ssub.s32 %s24, %s31
      %p269 = scmp.eq.s32.totalorder %s268, 0
      %s271 = sadd.s32 %s270, 1
      %s272 = scalar_select %p269, %s270, %s271
      %p275 = pneg %p269
      %p276 = scmp.eq.s32.totalorder %s24, 1
      %p277 = por %p275, %p276
      %p278 = scmp.ne.s32.totalorder %s270, %s273
      %p279 = scmp.eq.s32.totalorder %s24, 0
      %p280 = por %p278, %p279
      %p281 = scmp.ne.s32.totalorder %s270, %s273
      %p282 = scmp.eq.s32.totalorder %s29, 1
      %p283 = por %p281, %p282
      %p284 = scmp.ne.s32.totalorder %s273, %s274
      %p285 = scmp.eq.s32.totalorder %s29, 0
      %p286 = por %p284, %p285
      %p287 = scmp.ne.s32.totalorder %s273, %s274
      %p288 = scmp.eq.s32.totalorder %s30, 1
      %p289 = por %p287, %p288
      %p291 = scmp.ne.s32.totalorder %s274, %s290
      %p292 = scmp.eq.s32.totalorder %s30, 0
      %p293 = por %p291, %p292
      %p294 = scmp.le.s32.totalorder 1, %s24
      %p295 = scmp.lt.s32.totalorder %s24, 3
      %p296 = pnand %p294, %p295
      %p297 = pneg %p296
      // Predicated region
      $region9: #{tpu_custom_call.1} parent=5 // pred_check
        _
      $region10: #{tpu_custom_call.1} parent=5 // pred_check_branch
        %299 = sbr.rel (%p296) target = $region12
      $region11: #{tpu_custom_call.1} parent=5 // pred_region
        %s300 = ssub.s32 %s24, 1
        // Predicated region
        $region13: #{tpu_custom_call.1} parent=11 // pred_check
          %p301 = pneg %p71
        $region14: #{tpu_custom_call.1} parent=11 // pred_check_branch
          %303 = sbr.rel (%p301) target = $region16
        $region15: #{tpu_custom_call.1} parent=11 // pred_region
          %s305 = ssub.s32 256, 256
          %306 = vsyncadd [#allocation4], %s305
          %s307 = sshll.u32 [#allocation3], 4
          %s308 = int_to_ptr.vmem [resolvable:$true] %s307
          %313 = dma.hbm_to_vmem [thread:$0]  %s1, 256, %s308, [#allocation4], 64, 64, 4
        $region16: #{tpu_custom_call.1} parent=11 // pred_fallthru
          _
        // Predicated region
        $region17: #{tpu_custom_call.1} parent=11 // pred_check
          %p314 = pneg %p92
        $region18: #{tpu_custom_call.1} parent=11 // pred_check_branch
          %316 = sbr.rel (%p314) target = $region20
        $region19: #{tpu_custom_call.1} parent=11 // pred_region
          _
        $region20: #{tpu_custom_call.1} parent=11 // pred_fallthru
          _
        // Predicated region
        $region21: #{tpu_custom_call.1} parent=11 // pred_check
          %p317 = pneg %p113
        $region22: #{tpu_custom_call.1} parent=11 // pred_check_branch
          %319 = sbr.rel (%p317) target = $region24
        $region23: #{tpu_custom_call.1} parent=11 // pred_region
          _
        $region24: #{tpu_custom_call.1} parent=11 // pred_fallthru
          _
        // Predicated region
        $region25: #{tpu_custom_call.1} parent=11 // pred_check
          %p320 = pneg %p134
        $region26: #{tpu_custom_call.1} parent=11 // pred_check_branch
          %322 = sbr.rel (%p320) target = $region28
        $region27: #{tpu_custom_call.1} parent=11 // pred_region
          _
        $region28: #{tpu_custom_call.1} parent=11 // pred_fallthru
          _
        // Predicated region
        $region29: #{tpu_custom_call.1} parent=11 // pred_check
          %p323 = pneg %p155
        $region30: #{tpu_custom_call.1} parent=11 // pred_check_branch
          %325 = sbr.rel (%p323) target = $region32
        $region31: #{tpu_custom_call.1} parent=11 // pred_region
          %s327 = ssub.s32 1024, 1024
          %328 = vsyncadd [#allocation7], %s327
          %s329 = sshll.u32 [#allocation6], 4
          %s330 = int_to_ptr.vmem [resolvable:$true] %s329
          %335 = dma.hbm_to_vmem [thread:$0]  %s5, 1024, %s330, [#allocation7], 64, 64, 4
        $region32: #{tpu_custom_call.1} parent=11 // pred_fallthru
          _
        // Predicated region
        $region33: #{tpu_custom_call.1} parent=11 // pred_check
          %p336 = pneg %p176
        $region34: #{tpu_custom_call.1} parent=11 // pred_check_branch
          %338 = sbr.rel (%p336) target = $region36
        $region35: #{tpu_custom_call.1} parent=11 // pred_region
          _
        $region36: #{tpu_custom_call.1} parent=11 // pred_fallthru
          _
        // Predicated region
        $region37: #{tpu_custom_call.1} parent=11 // pred_check
          %p339 = pneg %p197
        $region38: #{tpu_custom_call.1} parent=11 // pred_check_branch
          %341 = sbr.rel (%p339) target = $region40
        $region39: #{tpu_custom_call.1} parent=11 // pred_region
          %s343 = ssub.s32 1024, 1024
          %344 = vsyncadd [#allocation7], %s343
          %s345 = sshll.u32 [#allocation8], 4
          %s346 = int_to_ptr.vmem [resolvable:$true] %s345
          %351 = dma.hbm_to_vmem [thread:$0]  %s7, 1024, %s346, [#allocation7], 64, 64, 4
        $region40: #{tpu_custom_call.1} parent=11 // pred_fallthru
          _
        // Predicated region
        $region41: #{tpu_custom_call.1} parent=11 // pred_check
          %p352 = pneg %p218
        $region42: #{tpu_custom_call.1} parent=11 // pred_check_branch
          %354 = sbr.rel (%p352) target = $region44
        $region43: #{tpu_custom_call.1} parent=11 // pred_region
          _
        $region44: #{tpu_custom_call.1} parent=11 // pred_fallthru
          _
        // Predicated region
        $region45: #{tpu_custom_call.1} parent=11 // pred_check
          %p355 = pneg %p239
        $region46: #{tpu_custom_call.1} parent=11 // pred_check_branch
          %357 = sbr.rel (%p355) target = $region48
        $region47: #{tpu_custom_call.1} parent=11 // pred_region
          _
        $region48: #{tpu_custom_call.1} parent=11 // pred_fallthru
          _
        // Predicated region
        $region49: #{tpu_custom_call.1} parent=11 // pred_check
          %p358 = pneg %p260
        $region50: #{tpu_custom_call.1} parent=11 // pred_check_branch
          %360 = sbr.rel (%p358) target = $region52
        $region51: #{tpu_custom_call.1} parent=11 // pred_region
          _
        $region52: #{tpu_custom_call.1} parent=11 // pred_fallthru
          _
      $region12: #{tpu_custom_call.1} parent=5 // pred_fallthru
        _
      %p361 = scmp.lt.s32.totalorder %s24, 2
      // Predicated region
      $region53: #{tpu_custom_call.1} parent=5 // pred_check
        %p362 = pneg %p361
      $region54: #{tpu_custom_call.1} parent=5 // pred_check_branch
        %364 = sbr.rel (%p362) target = $region56
      $region55: #{tpu_custom_call.1} parent=5 // pred_region
        // Predicated region
        $region57: #{tpu_custom_call.1} parent=55 // pred_check
          %p365 = pneg %p44
        $region58: #{tpu_custom_call.1} parent=55 // pred_check_branch
          %367 = sbr.rel (%p365) target = $region60
        $region59: #{tpu_custom_call.1} parent=55 // pred_region
          %s368 = smul.u32 4, %s24
          %s369 = ssub.s32 5, %s368
          %p370 = scmp.lt.s32.totalorder %s369, 4
          %s371 = scalar_select %p370, %s369, 4
          %s372 = smul.u32 128, %s371
          %p373 = scmp.lt.s32.totalorder %s368, 4
          %s374 = scalar_select %p373, %s368, 4
          %s375 = smul.addr %s374, 8
          %s376 = scalar_lea.vmem %s0, %s375
          %s377 = smul.u32 4, %s24
          %s378 = ssub.s32 5, %s377
          %p379 = scmp.lt.s32.totalorder %s378, 4
          %s380 = scalar_select %p379, %s378, 4
          %s381 = smul.u32 128, %s380
        $region60: #{tpu_custom_call.1} parent=55 // pred_fallthru
          _
      $region56: #{tpu_custom_call.1} parent=5 // pred_fallthru
        _
      %p382 = scmp.le.s32.totalorder 1, %s24
      %p383 = scmp.lt.s32.totalorder %s24, 3
      %p384 = pnand %p382, %p383
      %p385 = pneg %p384
      // Predicated region
      $region61: #{tpu_custom_call.1} parent=5 // pred_check
        _
      $region62: #{tpu_custom_call.1} parent=5 // pred_check_branch
        %387 = sbr.rel (%p384) target = $region64
      $region63: #{tpu_custom_call.1} parent=5 // pred_region
        %s388 = ssub.s32 %s24, 1
        // Predicated region
        $region65: #{tpu_custom_call.1} parent=63 // pred_check
          %p389 = pneg %p71
        $region66: #{tpu_custom_call.1} parent=63 // pred_check_branch
          %391 = sbr.rel (%p389) target = $region68
        $region67: #{tpu_custom_call.1} parent=63 // pred_region
          %392 = dma.done [#allocation4], 256
        $region68: #{tpu_custom_call.1} parent=63 // pred_fallthru
          _
        // Predicated region
        $region69: #{tpu_custom_call.1} parent=63 // pred_check
          %p393 = pneg %p155
        $region70: #{tpu_custom_call.1} parent=63 // pred_check_branch
          %395 = sbr.rel (%p393) target = $region72
        $region71: #{tpu_custom_call.1} parent=63 // pred_region
          %396 = dma.done [#allocation7], 1024
        $region72: #{tpu_custom_call.1} parent=63 // pred_fallthru
          _
        // Predicated region
        $region73: #{tpu_custom_call.1} parent=63 // pred_check
          %p397 = pneg %p197
        $region74: #{tpu_custom_call.1} parent=63 // pred_check_branch
          %399 = sbr.rel (%p397) target = $region76
        $region75: #{tpu_custom_call.1} parent=63 // pred_region
          %400 = dma.done [#allocation7], 1024
        $region76: #{tpu_custom_call.1} parent=63 // pred_fallthru
          _
        %s401 = smul.u32 4, %s29
        %s402 = ssub.s32 5, %s401
        %p403 = scmp.lt.s32.totalorder %s402, 4
        %s404 = scalar_select %p403, %s402, 4
        %s405 = smul.u32 128, %s404
        %p406 = scmp.lt.s32.totalorder %s401, 4
        %s407 = scalar_select %p406, %s401, 4
        %s408 = smul.addr %s407, 8
        %s409 = scalar_lea.vmem %s0, %s408
        %p410 = pneg %p50
        %p411 = pneg %p47
        %p412 = pneg %p71
        %p413 = pneg %p68
        %p414 = pneg %p92
        %p415 = pneg %p89
        %p416 = pneg %p113
        %p417 = pneg %p110
        %p418 = pneg %p134
        %p419 = pneg %p131
        %p420 = pneg %p155
        %p421 = pneg %p152
        %p422 = pneg %p176
        %p423 = pneg %p173
        %p424 = pneg %p197
        %p425 = pneg %p194
        %p426 = pneg %p218
        %p427 = pneg %p215
        %p428 = pneg %p239
        %p429 = pneg %p236
        %p430 = pneg %p260
        %p431 = pneg %p257
        %p432 = pneg %p286
        %p433 = pneg %p283
        %s434 = sand.u32 %s273, 1
        %s435 = scalar_lea.sflag [#allocation5], %s434
        %s436 = sand.u32 %s273, 1
        %s437 = smul.addr %s436, 32
        %s438 = scalar_lea.vmem [#allocation9], %s437
        %s439 = smul.u32 4, %s29
        %s440 = ssub.s32 5, %s439
        %p441 = scmp.lt.s32.totalorder %s440, 4
        %s442 = scalar_select %p441, %s440, 4
        %s443 = smul.u32 128, %s442
        %p444 = scmp.lt.s32.totalorder %s439, 4
        %s445 = scalar_select %p444, %s439, 4
        %s446 = smul.addr %s445, 8
        %s447 = scalar_lea.vmem %s0, %s446
        %s448 = smul.u32 4, %s29
        %s449 = ssub.s32 5, %s448
        %p450 = scmp.lt.s32.totalorder %s449, 4
        %s451 = scalar_select %p450, %s449, 4
        %s452 = smul.u32 128, %s451
        %s453 = smul.u32 4, %s29
        %s454 = ssub.s32 5, %s453
        %p455 = scmp.lt.s32.totalorder %s454, 4
        %s456 = scalar_select %p455, %s454, 4
        %s457 = smul.u32 128, %s456
        %v460 = vld [vmem:[%s447] sm:$0xff]
        %v461 = vld [vmem:[%s447 + $0x8] sm:$0xff]
        %v462 = vld [vmem:[%s447 + $0x10] sm:$0xff]
        %v463 = vld [vmem:[%s447 + $0x18] sm:$0xff]
        %v464 = vpack.c.bf16 %v461, %v460
        %v465 = vpack.c.bf16 %v463, %v462
        %v466 = vld [vmem:[#allocation3] sm:$0xf]
        %v467 = vld [vmem:[#allocation3 + $0x4] sm:$0xf]
        %v468 = vld [vmem:[#allocation3 + $0x8] sm:$0xf]
        %v469 = vld [vmem:[#allocation3 + $0xc] sm:$0xf]
        %v470 = vld [vmem:[%s2] sm:$0x1]
        %v472 = vlaneseq
        %v473 = vshrl.u32 %v472, 7
        %v474 = vsub.s32 0, %v473
        %v475 = vrot.slane %v470, %v474
        %v481 = vunpack.c.l.b16 %v466
        %v482 = vunpack.c.l.b16 %v467
        %v483 = vunpack.c.l.b16 %v468
        %v484 = vunpack.c.l.b16 %v469
        %v485 = vpack.c.b16 %v482, %v481
        %v486 = vpack.c.b16 %v484, %v483
        %vm489 = vcmask 261120
        %v491 = vsel %vm489, %v464, 0
        %v494 = vsel %vm489, %v465, 0
        %496 = vmatprep.subr.bf16.mxu0 0
        %497 = vmatpush1.bf16.msra.mxu0 0
        %498 = vmatprep.subr.bf16.mxu0 0
        %499 = vmatpush1.bf16.msra.mxu0 0
        %500 = vmatprep.subr.bf16.mxu0 0
        %501 = vmatpush1.bf16.msra.mxu0 0
        %502 = vmatprep.subr.bf16.mxu0 0
        %503 = vmatpush1.bf16.msra.mxu0 0
        %504 = vmatprep.subr.bf16.mxu0 0
        %505 = vmatpush1.bf16.msra.mxu0 0
        %506 = vmatprep.subr.bf16.mxu0 0
        %507 = vmatpush1.bf16.msra.mxu0 0
        %508 = vmatprep.subr.bf16.mxu0 0
        %509 = vmatpush1.bf16.msra.mxu0 %v486
        %510 = vmatprep.subr.bf16.mxu0 0
        %511 = vmatpush1.bf16.msra.mxu0 %v485
        %512 = vmatprep.subr.bf16.mxu0 0
        %513 = vmatpush2.bf16.msra.mxu0 0
        %514 = vmatprep.subr.bf16.mxu0 0
        %515 = vmatpush2.bf16.msra.mxu0 0
        %516 = vmatprep.subr.bf16.mxu0 0
        %517 = vmatpush2.bf16.msra.mxu0 0
        %518 = vmatprep.subr.bf16.mxu0 0
        %519 = vmatpush2.bf16.msra.mxu0 0
        %520 = vmatprep.subr.bf16.mxu0 0
        %521 = vmatpush2.bf16.msra.mxu0 0
        %522 = vmatprep.subr.bf16.mxu0 0
        %523 = vmatpush2.bf16.msra.mxu0 0
        %524 = vmatprep.subr.bf16.mxu0 0
        %525 = vmatpush2.bf16.msra.mxu0 0
        %526 = vmatprep.subr.bf16.mxu0 0
        %527 = vmatpush2.bf16.msra.mxu0 0
        %528 = vmatprep.mubr.bf16.mxu0 0
        %529 = vmatmul.mubr.bf16.gmra.mxu0 %v491
        %v530 = vpop.f32.mrf.mxu0
        %v531 = vadd.f32 %v475, %v530
        %v532 = vpop.f32.mrf.mxu0
        %v533 = vpop.f32.mrf.mxu0
        %v534 = vadd.f32 %v475, %v533
        %v535 = vpop.f32.mrf.mxu0
        %536 = vmatprep.mubr.bf16.mxu0 0
        %537 = vmatmul.mubr.bf16.gmra.mxu0 %v494
        %v538 = vpop.f32.mrf.mxu0
        %v539 = vadd.f32 %v475, %v538
        %v540 = vpop.f32.mrf.mxu0
        %v541 = vpop.f32.mrf.mxu0
        %v542 = vadd.f32 %v475, %v541
        %v543 = vpop.f32.mrf.mxu0
        %544 = vdwg.mxu0
        %v545 = vpack.c.bf16 %v534, %v531
        %v546 = vpack.c.bf16 %v542, %v539
        %v547 = vmul.bf16 %v545, 1045249613
        %v548 = vmul.bf16 %v546, 1045249613
        %v549 = vmax.bf16 %v545, %v547
        %v550 = vmax.bf16 %v546, %v548
        %v551 = vld [vmem:[%s3] sm:$0xf]
        %v552 = vld [vmem:[%s3 + $0x4] sm:$0xf]
        %v553 = vld [vmem:[%s3 + $0x8] sm:$0xf]
        %v554 = vld [vmem:[%s3 + $0xc] sm:$0xf]
        %v555 = vld [vmem:[%s3 + $0x10] sm:$0xf]
        %v556 = vld [vmem:[%s3 + $0x14] sm:$0xf]
        %v557 = vld [vmem:[%s3 + $0x18] sm:$0xf]
        %v558 = vld [vmem:[%s3 + $0x1c] sm:$0xf]
        %v559 = vld [vmem:[%s3 + $0x20] sm:$0xf]
        %v560 = vld [vmem:[%s3 + $0x24] sm:$0xf]
        %v561 = vld [vmem:[%s3 + $0x28] sm:$0xf]
        %v562 = vld [vmem:[%s3 + $0x2c] sm:$0xf]
        %v563 = vld [vmem:[%s3 + $0x30] sm:$0xf]
        %v564 = vld [vmem:[%s3 + $0x34] sm:$0xf]
        %v565 = vld [vmem:[%s3 + $0x38] sm:$0xf]
        %v566 = vld [vmem:[%s3 + $0x3c] sm:$0xf]
        %v567 = vld [vmem:[%s4] sm:$0x1]
        %v569 = vlaneseq
        %v570 = vshrl.u32 %v569, 7
        %v571 = vsub.s32 0, %v570
        %v572 = vrot.slane %v567, %v571
        %v590 = vunpack.c.l.b16 %v551
        %v591 = vunpack.c.l.b16 %v552
        %v592 = vunpack.c.l.b16 %v553
        %v593 = vunpack.c.l.b16 %v554
        %v594 = vunpack.c.l.b16 %v555
        %v595 = vunpack.c.l.b16 %v556
        %v596 = vunpack.c.l.b16 %v557
        %v597 = vunpack.c.l.b16 %v558
        %v598 = vunpack.c.l.b16 %v559
        %v599 = vunpack.c.l.b16 %v560
        %v600 = vunpack.c.l.b16 %v561
        %v601 = vunpack.c.l.b16 %v562
        %v602 = vunpack.c.l.b16 %v563
        %v603 = vunpack.c.l.b16 %v564
        %v604 = vunpack.c.l.b16 %v565
        %v605 = vunpack.c.l.b16 %v566
        %v606 = vpack.c.b16 %v591, %v590
        %v607 = vpack.c.b16 %v593, %v592
        %v608 = vpack.c.b16 %v595, %v594
        %v609 = vpack.c.b16 %v597, %v596
        %v610 = vpack.c.b16 %v599, %v598
        %v611 = vpack.c.b16 %v601, %v600
        %v612 = vpack.c.b16 %v603, %v602
        %v613 = vpack.c.b16 %v605, %v604
        %622 = vmatprep.subr.bf16.mxu0 0
        %623 = vmatpush1.bf16.msra.mxu0 %v613
        %624 = vmatprep.subr.bf16.mxu0 0
        %625 = vmatpush1.bf16.msra.mxu0 %v612
        %626 = vmatprep.subr.bf16.mxu0 0
        %627 = vmatpush1.bf16.msra.mxu0 %v611
        %628 = vmatprep.subr.bf16.mxu0 0
        %629 = vmatpush1.bf16.msra.mxu0 %v610
        %630 = vmatprep.subr.bf16.mxu0 0
        %631 = vmatpush1.bf16.msra.mxu0 %v609
        %632 = vmatprep.subr.bf16.mxu0 0
        %633 = vmatpush1.bf16.msra.mxu0 %v608
        %634 = vmatprep.subr.bf16.mxu0 0
        %635 = vmatpush1.bf16.msra.mxu0 %v607
        %636 = vmatprep.subr.bf16.mxu0 0
        %637 = vmatpush1.bf16.msra.mxu0 %v606
        %638 = vmatprep.subr.bf16.mxu0 0
        %639 = vmatpush2.bf16.msra.mxu0 0
        %640 = vmatprep.subr.bf16.mxu0 0
        %641 = vmatpush2.bf16.msra.mxu0 0
        %642 = vmatprep.subr.bf16.mxu0 0
        %643 = vmatpush2.bf16.msra.mxu0 0
        %644 = vmatprep.subr.bf16.mxu0 0
        %645 = vmatpush2.bf16.msra.mxu0 0
        %646 = vmatprep.subr.bf16.mxu0 0
        %647 = vmatpush2.bf16.msra.mxu0 0
        %648 = vmatprep.subr.bf16.mxu0 0
        %649 = vmatpush2.bf16.msra.mxu0 0
        %650 = vmatprep.subr.bf16.mxu0 0
        %651 = vmatpush2.bf16.msra.mxu0 0
        %652 = vmatprep.subr.bf16.mxu0 0
        %653 = vmatpush2.bf16.msra.mxu0 0
        %654 = vmatprep.mubr.bf16.mxu0 0
        %655 = vmatmul.mubr.bf16.gmra.mxu0 %v549
        %v656 = vpop.f32.mrf.mxu0
        %v657 = vadd.f32 %v572, %v656
        %v658 = vpop.f32.mrf.mxu0
        %v659 = vpop.f32.mrf.mxu0
        %v660 = vadd.f32 %v572, %v659
        %v661 = vpop.f32.mrf.mxu0
        %662 = vmatprep.mubr.bf16.mxu0 0
        %663 = vmatmul.mubr.bf16.gmra.mxu0 %v550
        %v664 = vpop.f32.mrf.mxu0
        %v665 = vadd.f32 %v572, %v664
        %v666 = vpop.f32.mrf.mxu0
        %v667 = vpop.f32.mrf.mxu0
        %v668 = vadd.f32 %v572, %v667
        %v669 = vpop.f32.mrf.mxu0
        %670 = vdwg.mxu0
        %v671 = vpack.c.bf16 %v660, %v657
        %v672 = vpack.c.bf16 %v668, %v665
        %v673 = vmul.bf16 %v671, 1045249613
        %v674 = vmul.bf16 %v672, 1045249613
        %v675 = vmax.bf16 %v671, %v673
        %v676 = vmax.bf16 %v672, %v674
        %v677 = vld [vmem:[#allocation6] sm:$0xf]
        %v678 = vld [vmem:[#allocation6 + $0x4] sm:$0xf]
        %v679 = vld [vmem:[#allocation6 + $0x8] sm:$0xf]
        %v680 = vld [vmem:[#allocation6 + $0xc] sm:$0xf]
        %v681 = vld [vmem:[#allocation6 + $0x10] sm:$0xf]
        %v682 = vld [vmem:[#allocation6 + $0x14] sm:$0xf]
        %v683 = vld [vmem:[#allocation6 + $0x18] sm:$0xf]
        %v684 = vld [vmem:[#allocation6 + $0x1c] sm:$0xf]
        %v685 = vld [vmem:[#allocation6 + $0x20] sm:$0xf]
        %v686 = vld [vmem:[#allocation6 + $0x24] sm:$0xf]
        %v687 = vld [vmem:[#allocation6 + $0x28] sm:$0xf]
        %v688 = vld [vmem:[#allocation6 + $0x2c] sm:$0xf]
        %v689 = vld [vmem:[#allocation6 + $0x30] sm:$0xf]
        %v690 = vld [vmem:[#allocation6 + $0x34] sm:$0xf]
        %v691 = vld [vmem:[#allocation6 + $0x38] sm:$0xf]
        %v692 = vld [vmem:[#allocation6 + $0x3c] sm:$0xf]
        %v693 = vld [vmem:[%s6] sm:$0x1]
        %v695 = vlaneseq
        %v696 = vshrl.u32 %v695, 7
        %v697 = vsub.s32 0, %v696
        %v698 = vrot.slane %v693, %v697
        %v716 = vunpack.c.l.b16 %v677
        %v717 = vunpack.c.l.b16 %v678
        %v718 = vunpack.c.l.b16 %v679
        %v719 = vunpack.c.l.b16 %v680
        %v720 = vunpack.c.l.b16 %v681
        %v721 = vunpack.c.l.b16 %v682
        %v722 = vunpack.c.l.b16 %v683
        %v723 = vunpack.c.l.b16 %v684
        %v724 = vunpack.c.l.b16 %v685
        %v725 = vunpack.c.l.b16 %v686
        %v726 = vunpack.c.l.b16 %v687
        %v727 = vunpack.c.l.b16 %v688
        %v728 = vunpack.c.l.b16 %v689
        %v729 = vunpack.c.l.b16 %v690
        %v730 = vunpack.c.l.b16 %v691
        %v731 = vunpack.c.l.b16 %v692
        %v732 = vpack.c.b16 %v717, %v716
        %v733 = vpack.c.b16 %v719, %v718
        %v734 = vpack.c.b16 %v721, %v720
        %v735 = vpack.c.b16 %v723, %v722
        %v736 = vpack.c.b16 %v725, %v724
        %v737 = vpack.c.b16 %v727, %v726
        %v738 = vpack.c.b16 %v729, %v728
        %v739 = vpack.c.b16 %v731, %v730
        %748 = vmatprep.subr.bf16.mxu0 0
        %749 = vmatpush1.bf16.msra.mxu0 %v739
        %750 = vmatprep.subr.bf16.mxu0 0
        %751 = vmatpush1.bf16.msra.mxu0 %v738
        %752 = vmatprep.subr.bf16.mxu0 0
        %753 = vmatpush1.bf16.msra.mxu0 %v737
        %754 = vmatprep.subr.bf16.mxu0 0
        %755 = vmatpush1.bf16.msra.mxu0 %v736
        %756 = vmatprep.subr.bf16.mxu0 0
        %757 = vmatpush1.bf16.msra.mxu0 %v735
        %758 = vmatprep.subr.bf16.mxu0 0
        %759 = vmatpush1.bf16.msra.mxu0 %v734
        %760 = vmatprep.subr.bf16.mxu0 0
        %761 = vmatpush1.bf16.msra.mxu0 %v733
        %762 = vmatprep.subr.bf16.mxu0 0
        %763 = vmatpush1.bf16.msra.mxu0 %v732
        %764 = vmatprep.subr.bf16.mxu0 0
        %765 = vmatpush2.bf16.msra.mxu0 0
        %766 = vmatprep.subr.bf16.mxu0 0
        %767 = vmatpush2.bf16.msra.mxu0 0
        %768 = vmatprep.subr.bf16.mxu0 0
        %769 = vmatpush2.bf16.msra.mxu0 0
        %770 = vmatprep.subr.bf16.mxu0 0
        %771 = vmatpush2.bf16.msra.mxu0 0
        %772 = vmatprep.subr.bf16.mxu0 0
        %773 = vmatpush2.bf16.msra.mxu0 0
        %774 = vmatprep.subr.bf16.mxu0 0
        %775 = vmatpush2.bf16.msra.mxu0 0
        %776 = vmatprep.subr.bf16.mxu0 0
        %777 = vmatpush2.bf16.msra.mxu0 0
        %778 = vmatprep.subr.bf16.mxu0 0
        %779 = vmatpush2.bf16.msra.mxu0 0
        %780 = vmatprep.mubr.bf16.mxu0 0
        %781 = vmatmul.mubr.bf16.gmra.mxu0 %v675
        %v782 = vpop.f32.mrf.mxu0
        %v783 = vadd.f32 %v698, %v782
        %v784 = vpop.f32.mrf.mxu0
        %v785 = vpop.f32.mrf.mxu0
        %v786 = vadd.f32 %v698, %v785
        %v787 = vpop.f32.mrf.mxu0
        %788 = vmatprep.mubr.bf16.mxu0 0
        %789 = vmatmul.mubr.bf16.gmra.mxu0 %v676
        %v790 = vpop.f32.mrf.mxu0
        %v791 = vadd.f32 %v698, %v790
        %v792 = vpop.f32.mrf.mxu0
        %v793 = vpop.f32.mrf.mxu0
        %v794 = vadd.f32 %v698, %v793
        %v795 = vpop.f32.mrf.mxu0
        %796 = vdwg.mxu0
        %v797 = vpack.c.bf16 %v786, %v783
        %v798 = vpack.c.bf16 %v794, %v791
        %v799 = vmul.bf16 %v797, 1045249613
        %v800 = vmul.bf16 %v798, 1045249613
        %v801 = vmax.bf16 %v797, %v799
        %v802 = vmax.bf16 %v798, %v800
        %v803 = vld [vmem:[#allocation8] sm:$0xf]
        %v804 = vld [vmem:[#allocation8 + $0x4] sm:$0xf]
        %v805 = vld [vmem:[#allocation8 + $0x8] sm:$0xf]
        %v806 = vld [vmem:[#allocation8 + $0xc] sm:$0xf]
        %v807 = vld [vmem:[#allocation8 + $0x10] sm:$0xf]
        %v808 = vld [vmem:[#allocation8 + $0x14] sm:$0xf]
        %v809 = vld [vmem:[#allocation8 + $0x18] sm:$0xf]
        %v810 = vld [vmem:[#allocation8 + $0x1c] sm:$0xf]
        %v811 = vld [vmem:[#allocation8 + $0x20] sm:$0xf]
        %v812 = vld [vmem:[#allocation8 + $0x24] sm:$0xf]
        %v813 = vld [vmem:[#allocation8 + $0x28] sm:$0xf]
        %v814 = vld [vmem:[#allocation8 + $0x2c] sm:$0xf]
        %v815 = vld [vmem:[#allocation8 + $0x30] sm:$0xf]
        %v816 = vld [vmem:[#allocation8 + $0x34] sm:$0xf]
        %v817 = vld [vmem:[#allocation8 + $0x38] sm:$0xf]
        %v818 = vld [vmem:[#allocation8 + $0x3c] sm:$0xf]
        %v819 = vld [vmem:[%s8] sm:$0x1]
        %v821 = vlaneseq
        %v822 = vshrl.u32 %v821, 7
        %v823 = vsub.s32 0, %v822
        %v824 = vrot.slane %v819, %v823
        %v842 = vunpack.c.l.b16 %v803
        %v843 = vunpack.c.l.b16 %v804
        %v844 = vunpack.c.l.b16 %v805
        %v845 = vunpack.c.l.b16 %v806
        %v846 = vunpack.c.l.b16 %v807
        %v847 = vunpack.c.l.b16 %v808
        %v848 = vunpack.c.l.b16 %v809
        %v849 = vunpack.c.l.b16 %v810
        %v850 = vunpack.c.l.b16 %v811
        %v851 = vunpack.c.l.b16 %v812
        %v852 = vunpack.c.l.b16 %v813
        %v853 = vunpack.c.l.b16 %v814
        %v854 = vunpack.c.l.b16 %v815
        %v855 = vunpack.c.l.b16 %v816
        %v856 = vunpack.c.l.b16 %v817
        %v857 = vunpack.c.l.b16 %v818
        %v858 = vpack.c.b16 %v843, %v842
        %v859 = vpack.c.b16 %v845, %v844
        %v860 = vpack.c.b16 %v847, %v846
        %v861 = vpack.c.b16 %v849, %v848
        %v862 = vpack.c.b16 %v851, %v850
        %v863 = vpack.c.b16 %v853, %v852
        %v864 = vpack.c.b16 %v855, %v854
        %v865 = vpack.c.b16 %v857, %v856
        %874 = vmatprep.subr.bf16.mxu0 0
        %875 = vmatpush1.bf16.msra.mxu0 %v865
        %876 = vmatprep.subr.bf16.mxu0 0
        %877 = vmatpush1.bf16.msra.mxu0 %v864
        %878 = vmatprep.subr.bf16.mxu0 0
        %879 = vmatpush1.bf16.msra.mxu0 %v863
        %880 = vmatprep.subr.bf16.mxu0 0
        %881 = vmatpush1.bf16.msra.mxu0 %v862
        %882 = vmatprep.subr.bf16.mxu0 0
        %883 = vmatpush1.bf16.msra.mxu0 %v861
        %884 = vmatprep.subr.bf16.mxu0 0
        %885 = vmatpush1.bf16.msra.mxu0 %v860
        %886 = vmatprep.subr.bf16.mxu0 0
        %887 = vmatpush1.bf16.msra.mxu0 %v859
        %888 = vmatprep.subr.bf16.mxu0 0
        %889 = vmatpush1.bf16.msra.mxu0 %v858
        %890 = vmatprep.subr.bf16.mxu0 0
        %891 = vmatpush2.bf16.msra.mxu0 0
        %892 = vmatprep.subr.bf16.mxu0 0
        %893 = vmatpush2.bf16.msra.mxu0 0
        %894 = vmatprep.subr.bf16.mxu0 0
        %895 = vmatpush2.bf16.msra.mxu0 0
        %896 = vmatprep.subr.bf16.mxu0 0
        %897 = vmatpush2.bf16.msra.mxu0 0
        %898 = vmatprep.subr.bf16.mxu0 0
        %899 = vmatpush2.bf16.msra.mxu0 0
        %900 = vmatprep.subr.bf16.mxu0 0
        %901 = vmatpush2.bf16.msra.mxu0 0
        %902 = vmatprep.subr.bf16.mxu0 0
        %903 = vmatpush2.bf16.msra.mxu0 0
        %904 = vmatprep.subr.bf16.mxu0 0
        %905 = vmatpush2.bf16.msra.mxu0 0
        %906 = vmatprep.mubr.bf16.mxu0 0
        %907 = vmatmul.mubr.bf16.gmra.mxu0 %v801
        %v908 = vpop.f32.mrf.mxu0
        %v909 = vadd.f32 %v824, %v908
        %v910 = vpop.f32.mrf.mxu0
        %v911 = vpop.f32.mrf.mxu0
        %v912 = vadd.f32 %v824, %v911
        %v913 = vpop.f32.mrf.mxu0
        %914 = vmatprep.mubr.bf16.mxu0 0
        %915 = vmatmul.mubr.bf16.gmra.mxu0 %v802
        %v916 = vpop.f32.mrf.mxu0
        %v917 = vadd.f32 %v824, %v916
        %v918 = vpop.f32.mrf.mxu0
        %v919 = vpop.f32.mrf.mxu0
        %v920 = vadd.f32 %v824, %v919
        %v921 = vpop.f32.mrf.mxu0
        %922 = vdwg.mxu0
        %v923 = vpack.c.bf16 %v912, %v909
        %v924 = vpack.c.bf16 %v920, %v917
        %v925 = vmul.bf16 %v923, 1045249613
        %v926 = vmul.bf16 %v924, 1045249613
        %v927 = vmax.bf16 %v923, %v925
        %v928 = vmax.bf16 %v924, %v926
        %v929 = vunpack.c.l.bf16 %v927
        %v930 = vunpack.c.h.bf16 %v927
        %v931 = vunpack.c.l.bf16 %v928
        %v932 = vunpack.c.h.bf16 %v928
        %v933 = vld [vmem:[%s9] sm:$0x1]
        %v935 = vlaneseq
        %v936 = vshrl.u32 %v935, 7
        %v937 = vsub.s32 0, %v936
        %v938 = vrot.slane %v933, %v937
        %v940 = vmul.f32 %v929, %v938
        %v941 = vmul.f32 %v930, %v938
        %v942 = vmul.f32 %v931, %v938
        %v943 = vmul.f32 %v932, %v938
        %944 = vadd.xlane.f32.xlu0 %v940
        %v945 = vpop.xlane.xlu0 %944
        %946 = vadd.xlane.f32.xlu0 %v941
        %v947 = vpop.xlane.xlu0 %946
        %948 = vadd.xlane.f32.xlu0 %v942
        %v949 = vpop.xlane.xlu0 %948
        %950 = vadd.xlane.f32.xlu0 %v943
        %v951 = vpop.xlane.xlu0 %950
        %v952 = vld [vmem:[#allocation2] sm:$0x1]
        %v954 = vlaneseq
        %v955 = vshrl.u32 %v954, 7
        %v956 = vsub.s32 0, %v955
        %v957 = vrot.slane %v952, %v956
        %v959 = vadd.f32 %v945, %v957
        %v960 = vadd.f32 %v947, %v957
        %v961 = vadd.f32 %v949, %v957
        %v962 = vadd.f32 %v951, %v957
        %v963 = vsub.f32 0.0, %v959
        %v964 = vsub.f32 0.0, %v960
        %v965 = vsub.f32 0.0, %v961
        %v966 = vsub.f32 0.0, %v962
        %v967 = vmul.f32 %v963, 1.442695
        %v968 = vpow.pop %v967
        %v969 = vmul.f32 %v964, 1.442695
        %v970 = vpow.pop %v969
        %v971 = vmul.f32 %v965, 1.442695
        %v972 = vpow.pop %v971
        %v973 = vmul.f32 %v966, 1.442695
        %v974 = vpow.pop %v973
        %v975 = vadd.f32 %v968, 1.0
        %v976 = vadd.f32 %v970, 1.0
        %v977 = vadd.f32 %v972, 1.0
        %v978 = vadd.f32 %v974, 1.0
        %v979 = vrcp.pop %v975
        %v980 = vmul.f32 1.0, %v979
        %v981 = vrcp.pop %v976
        %v982 = vmul.f32 1.0, %v981
        %v983 = vrcp.pop %v977
        %v984 = vmul.f32 1.0, %v983
        %v985 = vrcp.pop %v978
        %v986 = vmul.f32 1.0, %v985
        %988 = vset.pattern.permute.xlu0 0
        %989 = vperm.xlu0 %988, %v980
        %v990 = vpop.permute.xlu0 %989
        %993 = vset.pattern.permute.xlu0 0
        %994 = vperm.xlu0 %993, %v982
        %v995 = vpop.permute.xlu0 %994
        %998 = vset.pattern.permute.xlu0 0
        %999 = vperm.xlu0 %998, %v984
        %v1000 = vpop.permute.xlu0 %999
        %1003 = vset.pattern.permute.xlu0 0
        %1004 = vperm.xlu0 %1003, %v986
        %v1005 = vpop.permute.xlu0 %1004
        %1007 = vst [vmem:[%s438] sm:$0xff] %v990
        %1008 = vst [vmem:[%s438 + $0x8] sm:$0xff] %v995
        %1009 = vst [vmem:[%s438 + $0x10] sm:$0xff] %v1000
        %1010 = vst [vmem:[%s438 + $0x18] sm:$0xff] %v1005
        %s1011 = sand.u32 %s273, 1
        %s1012 = scalar_lea.sflag [#allocation5], %s1011
        %s1013 = sand.u32 %s273, 1
        %s1014 = smul.addr %s1013, 32
        %s1015 = scalar_lea.vmem [#allocation9], %s1014
        // Predicated region
        $region77: #{tpu_custom_call.1} parent=63 // pred_check
          %p1016 = pneg %p283
        $region78: #{tpu_custom_call.1} parent=63 // pred_check_branch
          %1018 = sbr.rel (%p1016) target = $region80
        $region79: #{tpu_custom_call.1} parent=63 // pred_region
          %s1019 = smul.u32 4, %s29
          %s1020 = ssub.s32 5, %s1019
          %p1021 = scmp.lt.s32.totalorder %s1020, 4
          %s1022 = scalar_select %p1021, %s1020, 4
          %s1023 = smul.u32 128, %s1022
          %s1025 = ssub.s32 512, %s1023
          %1026 = vsyncadd %s1012, %s1025
          %p1027 = scmp.ne.s32.totalorder 0, %s1023
          %s1028 = smul.addr %s1019, 128
          %s1029 = scalar_lea.hbm %s11, %s1028
          %s1030 = smul.u32 8, %s1022
          %s1031 = sshll.u32 %s1015, 4
          %s1032 = int_to_ptr.vmem [resolvable:$true] %s1031
          %s1033 = sshll.u32 %s1030, 4
          %1037 = dma.vmem_to_hbm [thread:$0]  (%p1027), %s1032, %s1033, %s1029, %s1012, 128, 128, 8
        $region80: #{tpu_custom_call.1} parent=63 // pred_fallthru
          _
      $region64: #{tpu_custom_call.1} parent=5 // pred_fallthru
        _
      %p1038 = scmp.le.s32.totalorder 2, %s24
      // Predicated region
      $region81: #{tpu_custom_call.1} parent=5 // pred_check
        %p1039 = pneg %p1038
      $region82: #{tpu_custom_call.1} parent=5 // pred_check_branch
        %1041 = sbr.rel (%p1039) target = $region84
      $region83: #{tpu_custom_call.1} parent=5 // pred_region
        %s1042 = ssub.s32 %s24, 2
        // Predicated region
        $region85: #{tpu_custom_call.1} parent=83 // pred_check
          %p1043 = pneg %p289
        $region86: #{tpu_custom_call.1} parent=83 // pred_check_branch
          %1045 = sbr.rel (%p1043) target = $region88
        $region87: #{tpu_custom_call.1} parent=83 // pred_region
          %s1046 = sand.u32 %s274, 1
          %s1047 = scalar_lea.sflag [#allocation5], %s1046
          %s1048 = sand.u32 %s274, 1
          %s1049 = smul.addr %s1048, 32
          %s1050 = scalar_lea.vmem [#allocation9], %s1049
          %1051 = dma.done %s1047, 512
        $region88: #{tpu_custom_call.1} parent=83 // pred_fallthru
          _
      $region84: #{tpu_custom_call.1} parent=5 // pred_fallthru
        _
    $region6: #{tpu_custom_call.1} parent=1 // loop_footer
      %s28 = sadd.s32 1, %s24
    $region7: #{tpu_custom_call.1} parent=1 // loop_footer_branch
      %23 = sbr.rel target = $region3
    $region8: #{tpu_custom_call.1} parent=1 // loop_exit
      _
    %1052 = vsyncpa [#allocation4], 1
    %s1053 = scalar_lea.sflag [#allocation4], 1
    %1054 = vsyncpa %s1053, 1
    %1055 = vsyncpa [#allocation7], 1
    %1056 = vsyncpa [#allocation5], 1
    %s1057 = scalar_lea.sflag [#allocation5], 1
    %1058 = vsyncpa %s1057, 1

</llo_original>
